<compile_context>
chip_gen: v7x
topology: tpu7x:2x2x1
jax: 0.10.0
libtpu: 0.0.40
codegen_flags: <defaults>
</compile_context>

<pallas_src>
import jax
import jax.numpy as jnp
from jax import lax
from jax.experimental import pallas as pl
from jax.experimental.pallas import tpu as pltpu


def _make_matH_kernel(tile):
    """Build the contraction kernel for a given lane-tile size (static)."""
    # Bound vreg live range inside a step: never materialize more than
    # (N0, chunk) of the product at once.  chunk must divide tile (both are
    # multiples of 128), so pick the largest power-of-two-ish divisor.
    if tile <= 4096:
        chunk = tile
    else:
        chunk = 128
        for cand in (2048, 1024, 512, 256):
            if tile % cand == 0:
                chunk = cand
                break
    n_chunks = tile // chunk

    def kernel(theta_ref, a_ref, h_ref):
        # theta_ref: (N0, 1)    full theta column (same for every grid step)
        # a_ref    : (N0, tile) lane block of the flattened matA
        # h_ref    : (1, tile)  corresponding block of flattened matH
        t = theta_ref[...]                                     # (N0, 1)
        # rsqrt: one EUP op (free slot); eps guard avoids NaN for theta == 0.
        inv_norm = lax.rsqrt(jnp.maximum(jnp.sum(t * t), 1e-30))
        coeff = t * inv_norm                                    # (N0, 1)

        # VPU broadcast-multiply + sublane (XLU) reduce: for small N0 a
        # (1, N0) x (N0, tile) MXU matmul would waste >= 255/256 MXU rows.
        # (If N0 grows large or many thetas are batched, switch this to an
        #  MXU jnp.dot with preferred_element_type=jnp.float32.)
        if n_chunks == 1:
            h_ref[...] = jnp.sum(coeff * a_ref[...], axis=0,
                                 keepdims=True).astype(h_ref.dtype)
        else:
            def body(c, carry):
                off = pl.multiple_of(c * chunk, chunk)
                blk = a_ref[:, pl.ds(off, chunk)]               # (N0, chunk)
                h_ref[:, pl.ds(off, chunk)] = jnp.sum(
                    coeff * blk, axis=0, keepdims=True).astype(h_ref.dtype)
                return carry

            lax.fori_loop(0, n_chunks, body, 0, unroll=(n_chunks <= 8))

    return kernel


def _pick_tile(m_round, n0, max_tile):
    """Largest multiple-of-128 lane tile that (a) divides m_round so matA is
    never padded up to a tile multiple, (b) fits the per-step VMEM budget."""
    # Double-buffered input block (n0 rows) + double-buffered output block
    # (1 row), f32: keep well under the most restrictive scoped VMEM (v7x).
    vmem_budget = 12 << 20
    bytes_per_lane = 4 * 2 * (n0 + 1)
    cap = max((vmem_budget // bytes_per_lane) // 128, 1) * 128
    cap = min(cap, (max_tile // 128) * 128)
    cap = max(cap, 128)
    if m_round <= cap:
        return m_round
    # Largest divisor of m_round (in units of 128 lanes) not exceeding cap.
    k = m_round // 128
    k_cap = cap // 128
    best = 1
    d = 1
    while d * d <= k:
        if k % d == 0:
            for cand in (d, k // d):
                if cand <= k_cap and cand > best:
                    best = cand
        d += 1
    return best * 128


def _is_multicore_tensorcore_chip():
    # v7x has 2 TensorCores per chip; v5e/v6e have 1.  Best-effort detection,
    # falls back to single-core behaviour (plain "parallel") on any failure.
    try:
        kind = jax.devices()[0].device_kind.lower()
        return ("v7" in kind) or ("7x" in kind)
    except Exception:  # pragma: no cover
        return False


def detect_rank_one_forward(theta, matA, *, max_tile=65536):
    """Pallas forward pass of DetectRankOneModel (real float32 path).

    theta: (N0,)        float32
    matA : (N0, N1, N2) float32
    returns: (loss, matH) where loss = second singular value of matH.
    """
    N0, N1, N2 = matA.shape
    M = N1 * N2

    a_flat = matA.reshape(N0, M).astype(jnp.float32)
    theta_col = theta.reshape(N0, 1).astype(jnp.float32)

    # Pad only up to the next 128-lane boundary (no-op when M % 128 == 0, as
    # for the module's shapes) -- never up to a multiple of the large tile.
    m_round = -(-M // 128) * 128
    if m_round != M:
        a_flat = jnp.pad(a_flat, ((0, 0), (0, m_round - M)))

    tile = _pick_tile(m_round, N0, max_tile)
    grid_len = m_round // tile

    if grid_len <= 1:
        semantics = ("arbitrary",)
    elif _is_multicore_tensorcore_chip():
        semantics = (pltpu.CORE_PARALLEL,)   # shard lane tiles across both TCs
    else:
        semantics = ("parallel",)

    h_flat = pl.pallas_call(
        _make_matH_kernel(tile),
        out_shape=jax.ShapeDtypeStruct((1, m_round), jnp.float32),
        grid_spec=pltpu.PrefetchScalarGridSpec(
            num_scalar_prefetch=0,
            grid=(grid_len,),
            in_specs=[
                pl.BlockSpec((N0, 1), lambda j: (0, 0)),     # theta column (tiny, reused)
                pl.BlockSpec((N0, tile), lambda j: (0, j)),  # lane block of matA
            ],
            out_specs=pl.BlockSpec((1, tile), lambda j: (0, j)),  # lane-dense output slab
        ),
        compiler_params=pltpu.CompilerParams(
            dimension_semantics=semantics,
            vmem_limit_bytes=32 * 1024 * 1024,  # safe on v5e/v6e/v7x; tile budget is 12 MiB
        ),
    )(theta_col, a_flat)

    matH = h_flat[0, :M].reshape(N1, N2)

    # TODO(synk): no Pallas SVD primitive; exact second singular value on the
    # tiny (N1, N2) matH via jnp.linalg.svd (Gram + eigvalsh was dropped: it
    # squares the condition number and loses sigma_2 accuracy in the
    # near-rank-one regime this model detects).
    s = jnp.linalg.svd(matH, full_matrices=False, compute_uv=False)
    loss = s[1]
    return loss, matH


def _reference_forward(theta, matA):
    # Mirrors the PyTorch module exactly (real path): normalize, contract, SVD.
    coeff = theta / jnp.linalg.norm(theta)
    matH = (coeff @ matA.reshape(matA.shape[0], -1)).reshape(matA.shape[1], matA.shape[2])
    s = jnp.linalg.svd(matH, full_matrices=False, compute_uv=False)
    return s[1], matH


if __name__ == "__main__":
    # Small shapes consistent with the module: matA (N0=8, N1=16, N2=16),
    # theta (N0,) real float32 parameters (uniform(-1, 1) like the module init).
    key = jax.random.PRNGKey(0)
    k_a, k_t = jax.random.split(key)
    N0, N1, N2 = 8, 16, 16
    matA = jax.random.normal(k_a, (N0, N1, N2), dtype=jnp.float32)
    theta = jax.random.uniform(k_t, (N0,), dtype=jnp.float32, minval=-1.0, maxval=1.0)

    loss, matH = detect_rank_one_forward(theta, matA)
    loss = jax.block_until_ready(loss)
    matH = jax.block_until_ready(matH)

    ref_loss, ref_H = _reference_forward(theta, matA)
    assert jnp.allclose(matH, ref_H, atol=1e-5, rtol=1e-5), "matH mismatch"
    assert jnp.allclose(loss, ref_loss, atol=1e-5, rtol=1e-5), "loss mismatch"

    print("KERNEL_OK")
</pallas_src>

<mosaic_0001>
module attributes {stable_mosaic.version = 11 : i64} {
  func.func @kernel(%arg0: i32, %arg1: memref<8x1xf32, #tpu.memory_space<vmem>>, %arg2: memref<8x256xf32, #tpu.memory_space<vmem>>, %arg3: memref<1x256xf32, #tpu.memory_space<vmem>>) attributes {dimension_semantics = [#tpu.dimension_semantics<arbitrary>], iteration_bounds = array<i64: 1>, scalar_prefetch = 0 : i64, scratch_operands = 0 : i64, tpu.core_type = #tpu.core_type<tc>, window_params = [{pipeline_mode = #tpu.pipeline_mode<synchronous>, transform_indices = @transform_0, window_bounds = array<i64: 8, 1>}, {transform_indices = @transform_1, window_bounds = array<i64: 8, 256>}, {transform_indices = @transform_2, window_bounds = array<i64: 1, 256>}]} {
    %c0 = arith.constant 0 : index
    %c0_0 = arith.constant 0 : index
    %0 = vector.load %arg1[%c0, %c0_0] : memref<8x1xf32, #tpu.memory_space<vmem>>, vector<8x1xf32>
    %1 = arith.mulf %0, %0 : vector<8x1xf32>
    %2 = vector.shape_cast %1 : vector<8x1xf32> to vector<1x8x1xf32>
    %cst = arith.constant dense<0.000000e+00> : vector<1xf32>
    %3 = vector.multi_reduction <add>, %2, %cst [1, 2] : vector<1x8x1xf32> to vector<1xf32>
    %4 = vector.shape_cast %3 : vector<1xf32> to vector<1x1x1xf32>
    %5 = vector.extract %4[0, 0, 0] : f32 from vector<1x1x1xf32>
    %cst_1 = arith.constant 1.000000e-30 : f32
    %6 = arith.maximumf %5, %cst_1 : f32
    %7 = math.rsqrt %6 : f32
    %8 = vector.broadcast %7 : f32 to vector<8x1xf32>
    %9 = arith.mulf %0, %8 : vector<8x1xf32>
    %c0_2 = arith.constant 0 : index
    %c0_3 = arith.constant 0 : index
    %10 = vector.load %arg2[%c0_2, %c0_3] : memref<8x256xf32, #tpu.memory_space<vmem>>, vector<8x256xf32>
    %11 = vector.broadcast %9 : vector<8x1xf32> to vector<8x256xf32>
    %12 = arith.mulf %11, %10 : vector<8x256xf32>
    %cst_4 = arith.constant dense<0.000000e+00> : vector<256xf32>
    %13 = vector.multi_reduction <add>, %12, %cst_4 [0] : vector<8x256xf32> to vector<256xf32>
    %14 = vector.shape_cast %13 : vector<256xf32> to vector<1x256xf32>
    %c0_5 = arith.constant 0 : index
    %c0_6 = arith.constant 0 : index
    %15 = vector.load %arg3[%c0_5, %c0_6] : memref<1x256xf32, #tpu.memory_space<vmem>>, vector<1x256xf32>
    tpu.vector_store %arg3[%c0_5, %c0_6], %14 {strides = array<i32>} : memref<1x256xf32, #tpu.memory_space<vmem>>, vector<1x256xf32>,
    return
  }
  func.func @transform_0(%arg0: i32) -> (i32, i32) {
    %c0_i32 = arith.constant 0 : i32
    %c0_i32_0 = arith.constant 0 : i32
    %c0_i32_1 = arith.constant 0 : i32
    return %c0_i32, %c0_i32_0 : i32, i32
  }
  func.func @transform_1(%arg0: i32) -> (i32, i32) {
    %c0_i32 = arith.constant 0 : i32
    %c0_i32_0 = arith.constant 0 : i32
    return %c0_i32, %arg0 : i32, i32
  }
  func.func @transform_2(%arg0: i32) -> (i32, i32) {
    %c0_i32 = arith.constant 0 : i32
    %c0_i32_0 = arith.constant 0 : i32
    return %c0_i32, %arg0 : i32, i32
  }
}

</mosaic_0001>

<llo_original>
// kernel: tpu_custom_call.1
$region0: #{tpu_custom_call.1}
  #allocation0 [shape = 'u32[]', space=smem, size = 0x4, offset = 0x4, fixed_abs, tag = 'smem constant byte address 0x4 - core index']
  #allocation1 [shape = 'u32[144,128]{1,0:T(1,128)}', space=vmem, size = 0x12000, scoped, tag = 'internal scratch']
  %s0 = inlined_call_operand.vmem [shape: f32[8,1], index: 0, kind: input, shape index: {}]
  %s1 = inlined_call_operand.hbm [shape: f32[8,256], index: 1, kind: input, shape index: {}]
  %s2 = inlined_call_operand.hbm [shape: f32[1,256], index: 2, kind: output, shape index: {}]
  %s3 = sld [smem:[#allocation0]]
  $region22: #{tpu_custom_call.1} parent=0
    _
  %s5 = ssub.s32 1, %s3
  %s6 = scalar_select 0, %s5, %s3
  $region1: #{tpu_custom_call.1} parent=0
    #allocation2 [shape = 'u8[8192]{0}', space=vmem, size = 0x2000, scoped, tag = 'input window, operand 1, single buffered']
    #allocation3 [shape = 's32[1]{0}', space=sflag, size = 0x4, scoped, tag = 'scoped memory for tpu_custom_call.1']
    #allocation4 [shape = 's32[1]{0}', space=sflag, size = 0x4, scoped, tag = 'scoped memory for tpu_custom_call.1']
    #allocation5 [shape = 'u8[1024]{0}', space=vmem, size = 0x400, scoped, tag = 'output window, operand 0, single buffered']
    %7 = vsyncpa [#allocation3], 0
    %8 = vsyncpa [#allocation4], 0
    // Predicated region
    $region2: #{tpu_custom_call.1} parent=1 // pred_check
      _
    $region3: #{tpu_custom_call.1} parent=1 // pred_check_branch
      %10 = sbr.rel (0) target = $region5
    $region4: #{tpu_custom_call.1} parent=1 // pred_region
      _
    $region5: #{tpu_custom_call.1} parent=1 // pred_fallthru
      _
    // Predicated region
    $region6: #{tpu_custom_call.1} parent=1 // pred_check
      _
    $region7: #{tpu_custom_call.1} parent=1 // pred_check_branch
      %12 = sbr.rel (0) target = $region9
    $region8: #{tpu_custom_call.1} parent=1 // pred_region
      %s14 = ssub.s32 256, 256
      %15 = vsyncadd [#allocation3], %s14
      %s17 = sshll.u32 [#allocation2], 4
      %s18 = int_to_ptr.vmem [resolvable:$true] %s17
      %20 = dma.hbm_to_vmem [thread:$0]  %s1, 256, %s18, [#allocation3]
    $region9: #{tpu_custom_call.1} parent=1 // pred_fallthru
      _
    // Predicated region
    $region10: #{tpu_custom_call.1} parent=1 // pred_check
      _
    $region11: #{tpu_custom_call.1} parent=1 // pred_check_branch
      %22 = sbr.rel (0) target = $region13
    $region12: #{tpu_custom_call.1} parent=1 // pred_region
      %23 = dma.done [#allocation3], 256
    $region13: #{tpu_custom_call.1} parent=1 // pred_fallthru
      _
    %v24 = vld [vmem:[%s0] sm:$0xff]
    %v25 = vmul.f32 %v24, %v24
    %vm26 = vcmask 7168
    %v27 = vsel %vm26, %v25, 0.0
    %28 = vadd.xlane.f32.xlu0 %v27
    %v29 = vpop.xlane.xlu0 %28
    %v30 = vrot.slane %v29, 4
    %v31 = vadd.f32 %v29, %v30
    %v32 = vrot.slane %v31, 2
    %v33 = vadd.f32 %v31, %v32
    %v34 = vrot.slane %v33, 1
    %v35 = vadd.f32 %v33, %v34
    %s36 = vtos %v35
    %s37 = smax.f32 %s36, 1e-30
    %v38 = vstv %s37
    %v39 = vrsqrt.pop %v38
    %s40 = vtos %v39
    %v41 = vstv %s40
    %v42 = vmul.f32 %v24, %v41
    %v43 = vld [vmem:[#allocation2] sm:$0xff]
    %v44 = vld [vmem:[#allocation2 + $0x8] sm:$0xff]
    %46 = vset.pattern.permute.xlu0 0
    %47 = vperm.xlu0 %46, %v42
    %v48 = vpop.permute.xlu0 %47
    %v50 = vmul.f32 %v48, %v43
    %v51 = vmul.f32 %v48, %v44
    %v52 = vrot.slane %v50, 4
    %v53 = vadd.f32 %v50, %v52
    %v54 = vrot.slane %v53, 2
    %v55 = vadd.f32 %v53, %v54
    %v56 = vrot.slane %v55, 1
    %v57 = vadd.f32 %v55, %v56
    %v58 = vrot.slane %v51, 4
    %v59 = vadd.f32 %v51, %v58
    %v60 = vrot.slane %v59, 2
    %v61 = vadd.f32 %v59, %v60
    %v62 = vrot.slane %v61, 1
    %v63 = vadd.f32 %v61, %v62
    %v66 = vcombine.low %v57, %v63
    %v68 = vunpack.c.l.s4 1966171168
    %v69 = vunpack.c.0.s8 %v68
    %v70 = vlaneseq
    %v71 = vshrl.u32 %v70, 7
    %v72 = vsub.s32 %v69, %v71
    %v73 = vrot.slane %v66, %v72
    %v75 = vunpack.c.l.s4 1966171168
    %v76 = vunpack.c.0.s8 %v75
    %v77 = vlaneseq
    %v78 = vshrl.u32 %v77, 7
    %v79 = vsub.s32 %v76, %v78
    %v80 = vrot.slane %v73, %v79
    %v82 = vlaneseq
    %vm83 = vcmp.ge.s32.totalorder %v82, 0
    %vm84 = vcmp.lt.s32.totalorder %v82, 256
    %vm85 = vmand %vm83, %vm84
    %86 = vst.msk [vmem:[#allocation5] sm:$0x3] %vm85, %v80
    // Predicated region
    $region14: #{tpu_custom_call.1} parent=1 // pred_check
      _
    $region15: #{tpu_custom_call.1} parent=1 // pred_check_branch
      %88 = sbr.rel (0) target = $region17
    $region16: #{tpu_custom_call.1} parent=1 // pred_region
      %s90 = ssub.s32 32, 32
      %91 = vsyncadd [#allocation4], %s90
      %s93 = sshll.u32 [#allocation5], 4
      %s94 = int_to_ptr.vmem [resolvable:$true] %s93
      %96 = dma.vmem_to_hbm [thread:$0]  %s94, 32, %s2, [#allocation4]
    $region17: #{tpu_custom_call.1} parent=1 // pred_fallthru
      _
    // Predicated region
    $region18: #{tpu_custom_call.1} parent=1 // pred_check
      _
    $region19: #{tpu_custom_call.1} parent=1 // pred_check_branch
      %98 = sbr.rel (0) target = $region21
    $region20: #{tpu_custom_call.1} parent=1 // pred_region
      %99 = dma.done [#allocation4], 32
    $region21: #{tpu_custom_call.1} parent=1 // pred_fallthru
      _
    %100 = vsyncpa [#allocation3], 1
    %101 = vsyncpa [#allocation4], 1

</llo_original>
